<compile_context>
chip_gen: v7x
topology: tpu7x:2x2x1
jax: 0.10.0
libtpu: 0.0.40
codegen_flags: <defaults>
</compile_context>

<pallas_src>
import jax
import jax.numpy as jnp
from jax.experimental import pallas as pl
from jax.experimental.pallas import tpu as pltpu

_LANES = 128          # vreg lane width (fast axis)
_ONE_SIXTH = 1.0 / 6.0


def _h_sigmoid_kernel(x_ref, o_ref):
    # relu6(x + 3) / 6 == clip(x + 3, 0, 6) * (1/6); computed in the input's
    # native dtype (weak Python-float constants do not promote), all VPU slots.
    x = x_ref[...]
    o_ref[...] = (jnp.clip(x + 3.0, 0.0, 6.0) * _ONE_SIXTH).astype(o_ref.dtype)


def _target_block_bytes() -> int:
    """Per-block byte target, generation-aware (conservative default)."""
    try:
        kind = jax.devices()[0].device_kind.lower()
    except Exception:
        kind = ""
    # v5e and older: 16 MiB scoped-VMEM default and <=~0.8 TB/s HBM ->
    # 2 MiB blocks (8 MiB double-buffered in+out) already hide the ~0.35 us
    # per-grid-step overhead.
    if any(v in kind for v in ("v2", "v3", "v4", "v5")):
        return 2 << 20
    # v6e / v7x: 4 MiB blocks (16 MiB total with double-buffered in+out);
    # well inside the 32 MiB scoped default and v7x's 64 MiB physical VMEM.
    return 4 << 20


def _run_bulk(flat2d: jax.Array) -> jax.Array:
    """Run the kernel on a lane-dense (rows, 128) slab."""
    rows, _ = flat2d.shape
    itemsize = jnp.dtype(flat2d.dtype).itemsize
    # dtype-aware sublane multiple: 8 for f32, 16 for bf16, 32 for int8/fp8.
    sublanes = max(8, 32 // itemsize)

    target_rows = max(sublanes, _target_block_bytes() // (_LANES * itemsize))
    if rows >= sublanes:
        tile_rows = int(min(target_rows, (rows // sublanes) * sublanes))
    else:
        tile_rows = rows          # tiny input: single full-extent block

    block_bytes = tile_rows * _LANES * itemsize
    # Double-buffered input + output blocks, plus 2 MiB headroom.
    vmem_limit = 4 * block_bytes + (2 << 20)

    return pl.pallas_call(
        _h_sigmoid_kernel,
        out_shape=jax.ShapeDtypeStruct((rows, _LANES), flat2d.dtype),
        grid=(pl.cdiv(rows, tile_rows),),
        in_specs=[pl.BlockSpec((tile_rows, _LANES), lambda i: (i, 0))],
        out_specs=pl.BlockSpec((tile_rows, _LANES), lambda i: (i, 0)),
        compiler_params=pltpu.CompilerParams(
            # Every row tile is independent -> v7x can shard the grid across
            # both TensorCores; harmless on single-TC v5e/v6e.
            dimension_semantics=("parallel",),
            vmem_limit_bytes=int(vmem_limit),
        ),
    )(flat2d)


def h_sigmoid(x: jax.Array) -> jax.Array:
    """Elementwise hard-sigmoid; layout-agnostic (NCHW in the PyTorch module)."""
    orig_shape = x.shape
    n = x.size
    if n == 0:
        return x

    flat = x.reshape(-1)
    bulk_n = (n // _LANES) * _LANES
    tail_n = n - bulk_n            # < 128 elements

    parts = []
    if bulk_n:
        bulk2d = flat[:bulk_n].reshape(bulk_n // _LANES, _LANES)
        parts.append(_run_bulk(bulk2d).reshape(-1))
    if tail_n:
        # <128-element remainder has no lane-dense presentation; plain jnp is
        # cheaper than a full-array pad + slice pass.
        t = flat[bulk_n:]
        parts.append((jnp.clip(t + 3.0, 0.0, 6.0) * _ONE_SIXTH).astype(x.dtype))

    out = parts[0] if len(parts) == 1 else jnp.concatenate(parts)
    return out.reshape(orig_shape)


if __name__ == "__main__":
    key = jax.random.PRNGKey(0)
    # Small NCHW input consistent with the module's use inside conv blocks.
    x = jax.random.normal(key, (2, 4, 16, 16), dtype=jnp.float32) * 4.0
    y = jax.block_until_ready(h_sigmoid(x))
    ref = jnp.clip(x + 3.0, 0.0, 6.0) / 6.0
    assert y.shape == x.shape and y.dtype == x.dtype
    assert jnp.allclose(y, ref, atol=1e-6), "mismatch vs reference"

    # Exercise the non-128-divisible (bulk + jnp-tail) path.
    x2 = jax.random.normal(jax.random.PRNGKey(1), (3, 5, 7, 11), jnp.float32) * 4.0
    y2 = jax.block_until_ready(h_sigmoid(x2))
    ref2 = jnp.clip(x2 + 3.0, 0.0, 6.0) / 6.0
    assert y2.shape == x2.shape and jnp.allclose(y2, ref2, atol=1e-6), \
        "mismatch vs reference (ragged path)"

    # Exercise the native bf16 compute path (dtype-aware sublane rounding).
    x3 = (jax.random.normal(jax.random.PRNGKey(2), (2, 8, 16, 16)) * 4.0).astype(
        jnp.bfloat16)
    y3 = jax.block_until_ready(h_sigmoid(x3))
    ref3 = (jnp.clip(x3 + 3.0, 0.0, 6.0) / 6.0).astype(jnp.bfloat16)
    assert y3.shape == x3.shape and y3.dtype == x3.dtype
    assert jnp.allclose(y3.astype(jnp.float32), ref3.astype(jnp.float32),
                        atol=1e-2), "mismatch vs reference (bf16 path)"

    print("KERNEL_OK")
</pallas_src>

<mosaic_0001>
module attributes {stable_mosaic.version = 11 : i64} {
  func.func @_h_sigmoid_kernel(%arg0: i32, %arg1: memref<16x128xf32, #tpu.memory_space<vmem>>, %arg2: memref<16x128xf32, #tpu.memory_space<vmem>>) attributes {dimension_semantics = [#tpu.dimension_semantics<parallel>], iteration_bounds = array<i64: 1>, scalar_prefetch = 0 : i64, scratch_operands = 0 : i64, tpu.core_type = #tpu.core_type<tc>, window_params = [{transform_indices = @transform_0, window_bounds = array<i64: 16, 128>}, {transform_indices = @transform_1, window_bounds = array<i64: 16, 128>}]} {
    %c0 = arith.constant 0 : index
    %c0_0 = arith.constant 0 : index
    %0 = vector.load %arg1[%c0, %c0_0] : memref<16x128xf32, #tpu.memory_space<vmem>>, vector<16x128xf32>
    %cst = arith.constant 3.000000e+00 : f32
    %1 = vector.broadcast %cst : f32 to vector<16x128xf32>
    %2 = arith.addf %0, %1 : vector<16x128xf32>
    %cst_1 = arith.constant 0.000000e+00 : f32
    %cst_2 = arith.constant 6.000000e+00 : f32
    %3 = vector.broadcast %cst_1 : f32 to vector<16x128xf32>
    %4 = arith.maximumf %3, %2 : vector<16x128xf32>
    %5 = vector.broadcast %cst_2 : f32 to vector<16x128xf32>
    %6 = arith.minimumf %5, %4 : vector<16x128xf32>
    %cst_3 = arith.constant 0.166666672 : f32
    %7 = vector.broadcast %cst_3 : f32 to vector<16x128xf32>
    %8 = arith.mulf %6, %7 : vector<16x128xf32>
    %c0_4 = arith.constant 0 : index
    %c0_5 = arith.constant 0 : index
    %9 = vector.load %arg2[%c0_4, %c0_5] : memref<16x128xf32, #tpu.memory_space<vmem>>, vector<16x128xf32>
    tpu.vector_store %arg2[%c0_4, %c0_5], %8 {strides = array<i32>} : memref<16x128xf32, #tpu.memory_space<vmem>>, vector<16x128xf32>,
    return
  }
  func.func @transform_0(%arg0: i32) -> (i32, i32) {
    %c0_i32 = arith.constant 0 : i32
    %c0_i32_0 = arith.constant 0 : i32
    return %arg0, %c0_i32 : i32, i32
  }
  func.func @transform_1(%arg0: i32) -> (i32, i32) {
    %c0_i32 = arith.constant 0 : i32
    %c0_i32_0 = arith.constant 0 : i32
    return %arg0, %c0_i32 : i32, i32
  }
}

</mosaic_0001>

<llo_original>
// kernel: tpu_custom_call.1
$region0: #{tpu_custom_call.1}
  #allocation0 [shape = 'u32[]', space=smem, size = 0x4, offset = 0x4, fixed_abs, tag = 'smem constant byte address 0x4 - core index']
  #allocation1 [shape = 'u32[144,128]{1,0:T(1,128)}', space=vmem, size = 0x12000, scoped, tag = 'internal scratch']
  %s0 = inlined_call_operand.hbm [shape: f32[16,128], index: 0, kind: input, shape index: {}]
  %s1 = inlined_call_operand.hbm [shape: f32[16,128], index: 1, kind: output, shape index: {}]
  %s2 = sld [smem:[#allocation0]]
  $region18: #{tpu_custom_call.1} parent=0
    _
  %s4 = ssub.s32 1, %s2
  %s5 = scalar_select 0, %s4, %s2
  $region1: #{tpu_custom_call.1} parent=0
    #allocation2 [shape = 'u8[8192]{0}', space=vmem, size = 0x2000, scoped, tag = 'input window, operand 0, single buffered']
    #allocation3 [shape = 's32[1]{0}', space=sflag, size = 0x4, scoped, tag = 'scoped memory for tpu_custom_call.1']
    #allocation4 [shape = 's32[1]{0}', space=sflag, size = 0x4, scoped, tag = 'scoped memory for tpu_custom_call.1']
    #allocation5 [shape = 'u8[8192]{0}', space=vmem, size = 0x2000, scoped, tag = 'output window, operand 0, single buffered']
    %6 = vsyncpa [#allocation3], 0
    %7 = vsyncpa [#allocation4], 0
    // Predicated region
    $region2: #{tpu_custom_call.1} parent=1 // pred_check
      _
    $region3: #{tpu_custom_call.1} parent=1 // pred_check_branch
      %9 = sbr.rel (0) target = $region5
    $region4: #{tpu_custom_call.1} parent=1 // pred_region
      %s11 = ssub.s32 256, 256
      %12 = vsyncadd [#allocation3], %s11
      %s13 = sshll.u32 [#allocation2], 4
      %s14 = int_to_ptr.vmem [resolvable:$true] %s13
      %19 = dma.hbm_to_vmem [thread:$0]  %s0, 256, %s14, [#allocation3], 128, 128, 8
    $region5: #{tpu_custom_call.1} parent=1 // pred_fallthru
      _
    // Predicated region
    $region6: #{tpu_custom_call.1} parent=1 // pred_check
      _
    $region7: #{tpu_custom_call.1} parent=1 // pred_check_branch
      %21 = sbr.rel (0) target = $region9
    $region8: #{tpu_custom_call.1} parent=1 // pred_region
      %22 = dma.done [#allocation3], 256
    $region9: #{tpu_custom_call.1} parent=1 // pred_fallthru
      _
    %v23 = vld [vmem:[#allocation2] sm:$0xff]
    %v24 = vld [vmem:[#allocation2 + $0x8] sm:$0xff]
    %v25 = vadd.f32 %v23, 3.0
    %v26 = vadd.f32 %v24, 3.0
    %v27 = vmax.f32 %v25, 0.0
    %v28 = vmax.f32 %v26, 0.0
    %v29 = vmin.f32 %v27, 6.0
    %v30 = vmin.f32 %v28, 6.0
    %v31 = vmul.f32 %v29, 0.16666667
    %v32 = vmul.f32 %v30, 0.16666667
    %33 = vst [vmem:[#allocation5] sm:$0xff] %v31
    %34 = vst [vmem:[#allocation5 + $0x8] sm:$0xff] %v32
    // Predicated region
    $region10: #{tpu_custom_call.1} parent=1 // pred_check
      _
    $region11: #{tpu_custom_call.1} parent=1 // pred_check_branch
      %36 = sbr.rel (0) target = $region13
    $region12: #{tpu_custom_call.1} parent=1 // pred_region
      %s38 = ssub.s32 256, 256
      %39 = vsyncadd [#allocation4], %s38
      %s40 = sshll.u32 [#allocation5], 4
      %s41 = int_to_ptr.vmem [resolvable:$true] %s40
      %46 = dma.vmem_to_hbm [thread:$0]  %s41, 256, %s1, [#allocation4], 128, 128, 8
    $region13: #{tpu_custom_call.1} parent=1 // pred_fallthru
      _
    // Predicated region
    $region14: #{tpu_custom_call.1} parent=1 // pred_check
      _
    $region15: #{tpu_custom_call.1} parent=1 // pred_check_branch
      %48 = sbr.rel (0) target = $region17
    $region16: #{tpu_custom_call.1} parent=1 // pred_region
      %49 = dma.done [#allocation4], 256
    $region17: #{tpu_custom_call.1} parent=1 // pred_fallthru
      _
    %50 = vsyncpa [#allocation3], 1
    %51 = vsyncpa [#allocation4], 1

</llo_original>
